<compile_context>
chip_gen: v7x
topology: tpu7x:2x2x1
jax: 0.10.0
libtpu: 0.0.40
codegen_flags: <defaults>
</compile_context>

<pallas_src>
import math

import jax
import jax.numpy as jnp
from jax.experimental import pallas as pl
from jax.experimental.pallas import tpu as pltpu


def _make_kernel(n_valid_cols: int):
    """Builds the kernel body; `n_valid_cols` = B*N (static) for ragged-tail masking."""

    def kernel(w_s_ref, w_d_ref, v_ref, exp_ref, s_ref, d_ref, bias_ref, o_ref):
        # Tile shapes (C = TB*N):
        #   w_s_ref, w_d_ref : (H, H)    resident weights
        #   v_ref            : (1, H)    resident, f32
        #   exp_ref          : (TB, C)   resident 0/1 expansion matrix, f32
        #   s_ref, d_ref     : (H, C)    packed static / dynamic hidden columns
        #   bias_ref         : (TB, H)   per-batch decoder bias (f32)
        #   o_ref            : (1, C)    attention probabilities
        c = o_ref.shape[-1]

        # MXU: dense (H, H) @ (H, C) for both input streams, f32 accumulation.
        pre = jnp.dot(w_s_ref[...], s_ref[...], preferred_element_type=jnp.float32)
        pre = pre + jnp.dot(w_d_ref[...], d_ref[...], preferred_element_type=jnp.float32)

        # Decoder bias expanded from one row per batch to its N columns:
        # (TB, H)^T @ (TB, C) -> (H, C), where E[t, c] = 1 iff c // N == t.
        pre = pre + jax.lax.dot_general(
            bias_ref[...], exp_ref[...],
            dimension_numbers=(((0,), (0,)), ((), ())),
            preferred_element_type=jnp.float32)

        e = jnp.tanh(pre)                                                   # (H, C) f32

        # v-projection: (1, H) @ (H, C) -> (1, C) logits.
        logits = jnp.dot(v_ref[...], e, preferred_element_type=jnp.float32)

        # Mask columns beyond the real batch (the ragged last block loads garbage there).
        col = jax.lax.broadcasted_iota(jnp.int32, logits.shape, 1) + pl.program_id(0) * c
        logits = jnp.where(col < n_valid_cols, logits, jnp.float32(-1e30))

        # Per-batch softmax over each group of N consecutive columns.  Subtracting the
        # block-wide max is exact for every group (any per-group constant is valid) and
        # numerically safe because |logit| <= ||v||_1.
        p = jnp.exp(logits - jnp.max(logits, axis=-1, keepdims=True))       # (1, C)
        group_sum = jax.lax.dot_general(                                    # (1, TB)
            p, exp_ref[...],
            dimension_numbers=(((1,), (1,)), ((), ())),
            preferred_element_type=jnp.float32)
        denom = jnp.dot(group_sum, exp_ref[...],                            # (1, C)
                        preferred_element_type=jnp.float32)
        o_ref[...] = (p / denom).astype(o_ref.dtype)                        # exact divide

    return kernel


def _vmem_limits():
    """(vmem_limit_bytes to request, per-grid-step working-set budget)."""
    cap = None
    try:
        cap = getattr(pltpu.get_tpu_info(), "vmem_capacity_bytes", None)
    except Exception:
        cap = None
    if not cap:
        cap = 64 << 20                       # conservative default (v7x per-core VMEM)
    limit = min((int(cap) * 3) // 4, 96 << 20)   # leave headroom for compiler scratch
    budget = min(limit // 2, 24 << 20)           # per-step target (review: <=~24 MiB on v7x)
    return int(limit), int(budget)


def _step_vmem_bytes(tb, H, N, in_bytes):
    """Estimated VMEM working set of one grid step for batch tile `tb`."""
    c = tb * N
    inputs = 2 * 2 * H * c * in_bytes        # s, d: 2 arrays x 2 pipeline buffers
    bias = 2 * tb * H * 4                    # double-buffered f32 bias block
    expand = 2 * tb * c * 4                  # resident 0/1 expansion matrix buffers
    interm = 4 * H * c * 4                   # matmul partials + e (f32, compiler-managed)
    weights = 2 * 2 * H * H * in_bytes + 4 * H   # W_s, W_d buffers + v
    out = 2 * 2 * c * 4
    return inputs + bias + expand + interm + weights + out


def _sanitize_tile(tb, B, N):
    """Clamp/align a batch tile so all blocks stay (8,128)-tileable."""
    tb = max(1, min(int(tb), B))
    if tb == B:
        return tb
    align = max(8, 128 // math.gcd(N, 128))  # tb*N % 128 == 0 and tb % 8 == 0
    if align >= B:
        return B
    return max(align, (tb // align) * align)


def _choose_batch_tile(B, H, N, in_bytes, step_budget):
    """VMEM-aware batch tile: biggest (aligned) tile whose step fits the budget."""
    if _step_vmem_bytes(B, H, N, in_bytes) <= step_budget:
        return B                              # whole problem in one block
    align = max(8, 128 // math.gcd(N, 128))
    if align >= B:
        return B
    tb = align
    while tb * 2 <= B and _step_vmem_bytes(tb * 2, H, N, in_bytes) <= step_budget:
        tb *= 2
    return tb


def attention_forward(W, v, static_hidden, dynamic_hidden, decoder_hidden, *,
                      batch_tile=None, mxu_dtype=None):
    """W: (1,H,3H) or (H,3H); v: (1,1,H) or (1,H); static/dynamic: (B,H,N);
    decoder: (B,H).  Returns (B, 1, N) attention probabilities.

    mxu_dtype: optional narrower dtype (e.g. jnp.bfloat16) for the HBM inputs and the
    MXU matmuls; accumulation / bias / softmax stay f32 and the output keeps the
    original input dtype.
    """
    B, H, N = static_hidden.shape
    out_dtype = static_hidden.dtype
    in_dtype = jnp.dtype(mxu_dtype) if mxu_dtype is not None else jnp.dtype(out_dtype)

    W = jnp.reshape(W, (H, 3 * H))
    v_row = jnp.reshape(v, (1, H)).astype(jnp.float32)
    W_s = W[:, :H].astype(in_dtype)
    W_d = W[:, H:2 * H].astype(in_dtype)
    W_dec = W[:, 2 * H:]

    # Decoder projection hoisted out of the grid (constant along N); kept in f32.
    bias = jnp.dot(decoder_hidden, W_dec.T,
                   preferred_element_type=jnp.float32).astype(jnp.float32)   # (B, H)

    # Pack (B, H, N) -> (H, B*N): one fused transpose+cast per input.  Columns are
    # lane-dense and the MXU free dimension becomes TB*N.
    # TODO(synk): when N is already a large multiple of 128 this repack pass could be
    # skipped in favor of blocking (B, H, N) directly; not needed for small-N usage.
    s_packed = jnp.transpose(static_hidden, (1, 0, 2)).reshape(H, B * N).astype(in_dtype)
    d_packed = jnp.transpose(dynamic_hidden, (1, 0, 2)).reshape(H, B * N).astype(in_dtype)

    vmem_limit_bytes, step_budget = _vmem_limits()
    if batch_tile is None:
        tb = _choose_batch_tile(B, H, N, jnp.dtype(in_dtype).itemsize, step_budget)
    else:
        tb = batch_tile
    tb = _sanitize_tile(tb, B, N)
    cols = tb * N
    num_blocks = pl.cdiv(B, tb)

    # 0/1 expansion matrix: E[t, c] = 1 iff column c belongs to block-local batch t.
    col_batch = jnp.arange(cols, dtype=jnp.int32) // N
    expand = (col_batch[None, :] ==
              jnp.arange(tb, dtype=jnp.int32)[:, None]).astype(jnp.float32)   # (tb, cols)

    out = pl.pallas_call(
        _make_kernel(B * N),
        out_shape=jax.ShapeDtypeStruct((1, B * N), out_dtype),
        grid_spec=pltpu.PrefetchScalarGridSpec(
            num_scalar_prefetch=0,
            grid=(num_blocks,),
            in_specs=[
                pl.BlockSpec((H, H), lambda b: (0, 0)),        # W_s (resident)
                pl.BlockSpec((H, H), lambda b: (0, 0)),        # W_d (resident)
                pl.BlockSpec((1, H), lambda b: (0, 0)),        # v   (resident, f32)
                pl.BlockSpec((tb, cols), lambda b: (0, 0)),    # expansion matrix (resident)
                pl.BlockSpec((H, cols), lambda b: (0, b)),     # packed static_hidden
                pl.BlockSpec((H, cols), lambda b: (0, b)),     # packed dynamic_hidden
                pl.BlockSpec((tb, H), lambda b: (b, 0)),       # decoder bias (f32)
            ],
            out_specs=pl.BlockSpec((1, cols), lambda b: (0, b)),
        ),
        compiler_params=pltpu.CompilerParams(
            dimension_semantics=("parallel",),
            vmem_limit_bytes=vmem_limit_bytes,
        ),
    )(W_s, W_d, v_row, expand, s_packed, d_packed, bias)

    return out.reshape(B, 1, N)


def attention_reference(W, v, static_hidden, dynamic_hidden, decoder_hidden):
    """Pure-JAX reference mirroring the PyTorch forward."""
    B, H, N = static_hidden.shape
    W = jnp.reshape(W, (H, 3 * H))
    v = jnp.reshape(v, (1, H))
    hidden = jnp.concatenate(
        [static_hidden, dynamic_hidden,
         jnp.broadcast_to(decoder_hidden[:, :, None], (B, H, N))],
        axis=1,
    )  # (B, 3H, N)
    e = jnp.tanh(jnp.einsum('hk,bkn->bhn', W, hidden))     # (B, H, N)
    logits = jnp.einsum('oh,bhn->bon', v, e)                # (B, 1, N)
    return jax.nn.softmax(logits, axis=2)


if __name__ == "__main__":
    B, H, N = 2, 32, 8
    key = jax.random.PRNGKey(0)
    k_w, k_v, k_s, k_d, k_dec = jax.random.split(key, 5)

    # Module-shaped parameters (nonzero so the kernel is non-trivial).
    W = jax.random.normal(k_w, (1, H, 3 * H), dtype=jnp.float32) * 0.1
    v = jax.random.normal(k_v, (1, 1, H), dtype=jnp.float32) * 0.1

    static_hidden = jax.random.normal(k_s, (B, H, N), dtype=jnp.float32)
    dynamic_hidden = jax.random.normal(k_d, (B, H, N), dtype=jnp.float32)
    decoder_hidden = jax.random.normal(k_dec, (B, H), dtype=jnp.float32)

    ref = attention_reference(W, v, static_hidden, dynamic_hidden, decoder_hidden)

    # Default (f32) path: strict parity with the PyTorch forward.
    out = attention_forward(W, v, static_hidden, dynamic_hidden, decoder_hidden)
    out = jax.block_until_ready(out)
    assert out.shape == (B, 1, N), out.shape
    assert jnp.allclose(out, ref, atol=1e-4, rtol=1e-4), "f32 kernel mismatch vs reference"

    # bf16 MXU path (main HBM-traffic lever on v6e/v7x); f32 accumulation throughout.
    out_bf16 = attention_forward(W, v, static_hidden, dynamic_hidden, decoder_hidden,
                                 mxu_dtype=jnp.bfloat16)
    out_bf16 = jax.block_until_ready(out_bf16)
    assert jnp.allclose(out_bf16, ref, atol=3e-2, rtol=3e-2), "bf16 kernel mismatch vs reference"

    print("KERNEL_OK")
</pallas_src>

<mosaic_0001>
module attributes {stable_mosaic.version = 11 : i64} {
  func.func @kernel(%arg0: i32, %arg1: memref<32x32xf32, #tpu.memory_space<vmem>>, %arg2: memref<32x32xf32, #tpu.memory_space<vmem>>, %arg3: memref<1x32xf32, #tpu.memory_space<vmem>>, %arg4: memref<2x16xf32, #tpu.memory_space<vmem>>, %arg5: memref<32x16xf32, #tpu.memory_space<vmem>>, %arg6: memref<32x16xf32, #tpu.memory_space<vmem>>, %arg7: memref<2x32xf32, #tpu.memory_space<vmem>>, %arg8: memref<1x16xf32, #tpu.memory_space<vmem>>) attributes {dimension_semantics = [#tpu.dimension_semantics<parallel>], iteration_bounds = array<i64: 1>, scalar_prefetch = 0 : i64, scratch_operands = 0 : i64, tpu.core_type = #tpu.core_type<tc>, window_params = [{pipeline_mode = #tpu.pipeline_mode<synchronous>, transform_indices = @transform_0, window_bounds = array<i64: 32, 32>}, {pipeline_mode = #tpu.pipeline_mode<synchronous>, transform_indices = @transform_1, window_bounds = array<i64: 32, 32>}, {pipeline_mode = #tpu.pipeline_mode<synchronous>, transform_indices = @transform_2, window_bounds = array<i64: 1, 32>}, {pipeline_mode = #tpu.pipeline_mode<synchronous>, transform_indices = @transform_3, window_bounds = array<i64: 2, 16>}, {transform_indices = @transform_4, window_bounds = array<i64: 32, 16>}, {transform_indices = @transform_5, window_bounds = array<i64: 32, 16>}, {transform_indices = @transform_6, window_bounds = array<i64: 2, 32>}, {transform_indices = @transform_7, window_bounds = array<i64: 1, 16>}]} {
    %c0 = arith.constant 0 : index
    %c0_0 = arith.constant 0 : index
    %0 = vector.load %arg1[%c0, %c0_0] : memref<32x32xf32, #tpu.memory_space<vmem>>, vector<32x32xf32>
    %c0_1 = arith.constant 0 : index
    %c0_2 = arith.constant 0 : index
    %1 = vector.load %arg5[%c0_1, %c0_2] : memref<32x16xf32, #tpu.memory_space<vmem>>, vector<32x16xf32>
    %cst = arith.constant dense<0.000000e+00> : vector<32x16xf32>
    %2 = tpu.matmul %0, %1, %cst {dimension_numbers = #tpu.dot_dimension_numbers<[1], [0], [0], [1], [0, 0, 1, 1], [], []>} : vector<32x32xf32>, vector<32x16xf32>, vector<32x16xf32> -> vector<32x16xf32>
    %c0_3 = arith.constant 0 : index
    %c0_4 = arith.constant 0 : index
    %3 = vector.load %arg2[%c0_3, %c0_4] : memref<32x32xf32, #tpu.memory_space<vmem>>, vector<32x32xf32>
    %c0_5 = arith.constant 0 : index
    %c0_6 = arith.constant 0 : index
    %4 = vector.load %arg6[%c0_5, %c0_6] : memref<32x16xf32, #tpu.memory_space<vmem>>, vector<32x16xf32>
    %cst_7 = arith.constant dense<0.000000e+00> : vector<32x16xf32>
    %5 = tpu.matmul %3, %4, %cst_7 {dimension_numbers = #tpu.dot_dimension_numbers<[1], [0], [0], [1], [0, 0, 1, 1], [], []>} : vector<32x32xf32>, vector<32x16xf32>, vector<32x16xf32> -> vector<32x16xf32>
    %6 = arith.addf %2, %5 : vector<32x16xf32>
    %c0_8 = arith.constant 0 : index
    %c0_9 = arith.constant 0 : index
    %7 = vector.load %arg7[%c0_8, %c0_9] : memref<2x32xf32, #tpu.memory_space<vmem>>, vector<2x32xf32>
    %c0_10 = arith.constant 0 : index
    %c0_11 = arith.constant 0 : index
    %8 = vector.load %arg4[%c0_10, %c0_11] : memref<2x16xf32, #tpu.memory_space<vmem>>, vector<2x16xf32>
    %cst_12 = arith.constant dense<0.000000e+00> : vector<32x16xf32>
    %9 = tpu.matmul %7, %8, %cst_12 {dimension_numbers = #tpu.dot_dimension_numbers<[0], [0], [1], [1], [0, 1, 1, 1], [], []>} : vector<2x32xf32>, vector<2x16xf32>, vector<32x16xf32> -> vector<32x16xf32>
    %10 = arith.addf %6, %9 : vector<32x16xf32>
    %11 = math.tanh %10 : vector<32x16xf32>
    %c0_13 = arith.constant 0 : index
    %c0_14 = arith.constant 0 : index
    %12 = vector.load %arg3[%c0_13, %c0_14] : memref<1x32xf32, #tpu.memory_space<vmem>>, vector<1x32xf32>
    %cst_15 = arith.constant dense<0.000000e+00> : vector<1x16xf32>
    %13 = tpu.matmul %12, %11, %cst_15 {dimension_numbers = #tpu.dot_dimension_numbers<[1], [0], [0], [1], [0, 0, 1, 1], [], []>} : vector<1x32xf32>, vector<32x16xf32>, vector<1x16xf32> -> vector<1x16xf32>
    %14 = tpu.iota {dimensions = array<i32: 1>} : vector<1x16xi32>
    %c16_i32 = arith.constant 16 : i32
    %15 = arith.muli %arg0, %c16_i32 : i32
    %16 = vector.broadcast %15 : i32 to vector<1x16xi32>
    %17 = arith.addi %14, %16 : vector<1x16xi32>
    %c16_i32_16 = arith.constant 16 : i32
    %18 = vector.broadcast %c16_i32_16 : i32 to vector<1x16xi32>
    %19 = arith.cmpi slt, %17, %18 : vector<1x16xi32>
    %cst_17 = arith.constant -1.000000e+30 : f32
    %20 = vector.broadcast %cst_17 : f32 to vector<1x16xf32>
    %21 = arith.select %19, %13, %20 : vector<1x16xi1>, vector<1x16xf32>
    %cst_18 = arith.constant dense<0xFF800000> : vector<1xf32>
    %22 = vector.multi_reduction <maximumf>, %21, %cst_18 [1] : vector<1x16xf32> to vector<1xf32>
    %23 = vector.shape_cast %22 : vector<1xf32> to vector<1x1xf32>
    %24 = vector.broadcast %23 : vector<1x1xf32> to vector<1x16xf32>
    %25 = arith.subf %21, %24 : vector<1x16xf32>
    %26 = math.exp %25 : vector<1x16xf32>
    %c0_19 = arith.constant 0 : index
    %c0_20 = arith.constant 0 : index
    %27 = vector.load %arg4[%c0_19, %c0_20] : memref<2x16xf32, #tpu.memory_space<vmem>>, vector<2x16xf32>
    %cst_21 = arith.constant dense<0.000000e+00> : vector<1x2xf32>
    %28 = tpu.matmul %26, %27, %cst_21 {dimension_numbers = #tpu.dot_dimension_numbers<[1], [1], [0], [0], [0, 0, 1, 0], [], []>} : vector<1x16xf32>, vector<2x16xf32>, vector<1x2xf32> -> vector<1x2xf32>
    %c0_22 = arith.constant 0 : index
    %c0_23 = arith.constant 0 : index
    %29 = vector.load %arg4[%c0_22, %c0_23] : memref<2x16xf32, #tpu.memory_space<vmem>>, vector<2x16xf32>
    %cst_24 = arith.constant dense<0.000000e+00> : vector<1x16xf32>
    %30 = tpu.matmul %28, %29, %cst_24 {dimension_numbers = #tpu.dot_dimension_numbers<[1], [0], [0], [1], [0, 0, 1, 1], [], []>} : vector<1x2xf32>, vector<2x16xf32>, vector<1x16xf32> -> vector<1x16xf32>
    %31 = arith.divf %26, %30 : vector<1x16xf32>
    %c0_25 = arith.constant 0 : index
    %c0_26 = arith.constant 0 : index
    %32 = vector.load %arg8[%c0_25, %c0_26] : memref<1x16xf32, #tpu.memory_space<vmem>>, vector<1x16xf32>
    tpu.vector_store %arg8[%c0_25, %c0_26], %31 {strides = array<i32>} : memref<1x16xf32, #tpu.memory_space<vmem>>, vector<1x16xf32>,
    return
  }
  func.func @transform_0(%arg0: i32) -> (i32, i32) {
    %c0_i32 = arith.constant 0 : i32
    %c0_i32_0 = arith.constant 0 : i32
    %c0_i32_1 = arith.constant 0 : i32
    return %c0_i32, %c0_i32_0 : i32, i32
  }
  func.func @transform_1(%arg0: i32) -> (i32, i32) {
    %c0_i32 = arith.constant 0 : i32
    %c0_i32_0 = arith.constant 0 : i32
    %c0_i32_1 = arith.constant 0 : i32
    return %c0_i32, %c0_i32_0 : i32, i32
  }
  func.func @transform_2(%arg0: i32) -> (i32, i32) {
    %c0_i32 = arith.constant 0 : i32
    %c0_i32_0 = arith.constant 0 : i32
    %c0_i32_1 = arith.constant 0 : i32
    return %c0_i32, %c0_i32_0 : i32, i32
  }
  func.func @transform_3(%arg0: i32) -> (i32, i32) {
    %c0_i32 = arith.constant 0 : i32
    %c0_i32_0 = arith.constant 0 : i32
    %c0_i32_1 = arith.constant 0 : i32
    return %c0_i32, %c0_i32_0 : i32, i32
  }
  func.func @transform_4(%arg0: i32) -> (i32, i32) {
    %c0_i32 = arith.constant 0 : i32
    %c0_i32_0 = arith.constant 0 : i32
    return %c0_i32, %arg0 : i32, i32
  }
  func.func @transform_5(%arg0: i32) -> (i32, i32) {
    %c0_i32 = arith.constant 0 : i32
    %c0_i32_0 = arith.constant 0 : i32
    return %c0_i32, %arg0 : i32, i32
  }
  func.func @transform_6(%arg0: i32) -> (i32, i32) {
    %c0_i32 = arith.constant 0 : i32
    %c0_i32_0 = arith.constant 0 : i32
    return %arg0, %c0_i32 : i32, i32
  }
  func.func @transform_7(%arg0: i32) -> (i32, i32) {
    %c0_i32 = arith.constant 0 : i32
    %c0_i32_0 = arith.constant 0 : i32
    return %c0_i32, %arg0 : i32, i32
  }
}

</mosaic_0001>

<llo_original>
// kernel: tpu_custom_call.1
$region0: #{tpu_custom_call.1}
  #allocation0 [shape = 'u32[]', space=smem, size = 0x4, offset = 0x4, fixed_abs, tag = 'smem constant byte address 0x4 - core index']
  #allocation1 [shape = 'u32[144,128]{1,0:T(1,128)}', space=vmem, size = 0x12000, scoped, tag = 'internal scratch']
  %s0 = inlined_call_operand.vmem [shape: f32[32,32], index: 0, kind: input, shape index: {}]
  %s1 = inlined_call_operand.vmem [shape: f32[32,32], index: 1, kind: input, shape index: {}]
  %s2 = inlined_call_operand.vmem [shape: f32[1,32], index: 2, kind: input, shape index: {}]
  %s3 = inlined_call_operand.vmem [shape: f32[2,16], index: 3, kind: input, shape index: {}]
  %s4 = inlined_call_operand.vmem [shape: f32[32,16], index: 4, kind: input, shape index: {}]
  %s5 = inlined_call_operand.vmem [shape: f32[32,16], index: 5, kind: input, shape index: {}]
  %s6 = inlined_call_operand.vmem [shape: f32[2,32], index: 6, kind: input, shape index: {}]
  %s7 = inlined_call_operand.hbm [shape: f32[1,16], index: 7, kind: output, shape index: {}]
  %s8 = sld [smem:[#allocation0]]
  $region38: #{tpu_custom_call.1} parent=0
    _
  %s10 = ssub.s32 1, %s8
  %s11 = scalar_select 0, %s10, %s8
  $region1: #{tpu_custom_call.1} parent=0
    #allocation2 [shape = 'u8[512]{0}', space=vmem, size = 0x400, scoped, tag = 'output window, operand 0, single buffered']
    #allocation3 [shape = 's32[1]{0}', space=sflag, size = 0x4, scoped, tag = 'scoped memory for tpu_custom_call.1']
    %12 = vsyncpa [#allocation3], 0
    // Predicated region
    $region2: #{tpu_custom_call.1} parent=1 // pred_check
      _
    $region3: #{tpu_custom_call.1} parent=1 // pred_check_branch
      %14 = sbr.rel (0) target = $region5
    $region4: #{tpu_custom_call.1} parent=1 // pred_region
      _
    $region5: #{tpu_custom_call.1} parent=1 // pred_fallthru
      _
    // Predicated region
    $region6: #{tpu_custom_call.1} parent=1 // pred_check
      _
    $region7: #{tpu_custom_call.1} parent=1 // pred_check_branch
      %16 = sbr.rel (0) target = $region9
    $region8: #{tpu_custom_call.1} parent=1 // pred_region
      _
    $region9: #{tpu_custom_call.1} parent=1 // pred_fallthru
      _
    // Predicated region
    $region10: #{tpu_custom_call.1} parent=1 // pred_check
      _
    $region11: #{tpu_custom_call.1} parent=1 // pred_check_branch
      %18 = sbr.rel (0) target = $region13
    $region12: #{tpu_custom_call.1} parent=1 // pred_region
      _
    $region13: #{tpu_custom_call.1} parent=1 // pred_fallthru
      _
    // Predicated region
    $region14: #{tpu_custom_call.1} parent=1 // pred_check
      _
    $region15: #{tpu_custom_call.1} parent=1 // pred_check_branch
      %20 = sbr.rel (0) target = $region17
    $region16: #{tpu_custom_call.1} parent=1 // pred_region
      _
    $region17: #{tpu_custom_call.1} parent=1 // pred_fallthru
      _
    // Predicated region
    $region18: #{tpu_custom_call.1} parent=1 // pred_check
      _
    $region19: #{tpu_custom_call.1} parent=1 // pred_check_branch
      %22 = sbr.rel (0) target = $region21
    $region20: #{tpu_custom_call.1} parent=1 // pred_region
      _
    $region21: #{tpu_custom_call.1} parent=1 // pred_fallthru
      _
    // Predicated region
    $region22: #{tpu_custom_call.1} parent=1 // pred_check
      _
    $region23: #{tpu_custom_call.1} parent=1 // pred_check_branch
      %24 = sbr.rel (0) target = $region25
    $region24: #{tpu_custom_call.1} parent=1 // pred_region
      _
    $region25: #{tpu_custom_call.1} parent=1 // pred_fallthru
      _
    // Predicated region
    $region26: #{tpu_custom_call.1} parent=1 // pred_check
      _
    $region27: #{tpu_custom_call.1} parent=1 // pred_check_branch
      %26 = sbr.rel (0) target = $region29
    $region28: #{tpu_custom_call.1} parent=1 // pred_region
      _
    $region29: #{tpu_custom_call.1} parent=1 // pred_fallthru
      _
    %v27 = vld [vmem:[%s0] sm:$0xff]
    %v28 = vld [vmem:[%s0 + $0x8] sm:$0xff]
    %v29 = vld [vmem:[%s0 + $0x10] sm:$0xff]
    %v30 = vld [vmem:[%s0 + $0x18] sm:$0xff]
    %v31 = vld [vmem:[%s4] sm:$0xff]
    %v32 = vld [vmem:[%s4 + $0x8] sm:$0xff]
    %v33 = vld [vmem:[%s4 + $0x10] sm:$0xff]
    %v34 = vld [vmem:[%s4 + $0x18] sm:$0xff]
    %v35 = vld [vmem:[%s1] sm:$0xff]
    %v36 = vld [vmem:[%s1 + $0x8] sm:$0xff]
    %v37 = vld [vmem:[%s1 + $0x10] sm:$0xff]
    %v38 = vld [vmem:[%s1 + $0x18] sm:$0xff]
    %v39 = vld [vmem:[%s5] sm:$0xff]
    %v40 = vld [vmem:[%s5 + $0x8] sm:$0xff]
    %v41 = vld [vmem:[%s5 + $0x10] sm:$0xff]
    %v42 = vld [vmem:[%s5 + $0x18] sm:$0xff]
    %vm43 = vcmask 261120
    %v45 = vsel %vm43, %v35, 0
    %v48 = vsel %vm43, %v36, 0
    %v51 = vsel %vm43, %v37, 0
    %v54 = vsel %vm43, %v38, 0
    %56 = vmatprep.subr.mxu0 0.0
    %57 = vmatpush1.msra.mxu0 %v39
    %58 = vmatprep.subr.mxu0 0.0
    %59 = vmatpush1.msra.mxu0 %v40
    %60 = vmatprep.subr.mxu0 0.0
    %61 = vmatpush1.msra.mxu0 %v41
    %62 = vmatprep.subr.mxu0 0.0
    %63 = vmatpush1.msra.mxu0 %v42
    %64 = vmatprep.subr.mxu0 0.0
    %65 = vmatpush1.msra.mxu0 0.0
    %66 = vmatprep.subr.mxu0 0.0
    %67 = vmatpush1.msra.mxu0 0.0
    %68 = vmatprep.subr.mxu0 0.0
    %69 = vmatpush1.msra.mxu0 0.0
    %70 = vmatprep.subr.mxu0 0.0
    %71 = vmatpush1.msra.mxu0 0.0
    %72 = vmatprep.subr.mxu0 0.0
    %73 = vmatpush1.msra.mxu0 0.0
    %74 = vmatprep.subr.mxu0 0.0
    %75 = vmatpush1.msra.mxu0 0.0
    %76 = vmatprep.subr.mxu0 0.0
    %77 = vmatpush1.msra.mxu0 0.0
    %78 = vmatprep.subr.mxu0 0.0
    %79 = vmatpush1.msra.mxu0 0.0
    %80 = vmatprep.subr.mxu0 0.0
    %81 = vmatpush1.msra.mxu0 0.0
    %82 = vmatprep.subr.mxu0 0.0
    %83 = vmatpush1.msra.mxu0 0.0
    %84 = vmatprep.subr.mxu0 0.0
    %85 = vmatpush1.msra.mxu0 0.0
    %86 = vmatprep.subr.mxu0 0.0
    %87 = vmatpush1.msra.mxu0 0.0
    %88 = vmatprep.subr.mxu0 0.0
    %89 = vmatpush1.msra.mxu0 0.0
    %90 = vmatprep.subr.mxu0 0.0
    %91 = vmatpush1.msra.mxu0 0.0
    %92 = vmatprep.subr.mxu0 0.0
    %93 = vmatpush1.msra.mxu0 0.0
    %94 = vmatprep.subr.mxu0 0.0
    %95 = vmatpush1.msra.mxu0 0.0
    %96 = vmatprep.subr.mxu0 0.0
    %97 = vmatpush1.msra.mxu0 0.0
    %98 = vmatprep.subr.mxu0 0.0
    %99 = vmatpush1.msra.mxu0 0.0
    %100 = vmatprep.subr.mxu0 0.0
    %101 = vmatpush1.msra.mxu0 0.0
    %102 = vmatprep.subr.mxu0 0.0
    %103 = vmatpush1.msra.mxu0 0.0
    %104 = vmatprep.subr.mxu0 0.0
    %105 = vmatpush1.msra.mxu0 0.0
    %106 = vmatprep.subr.mxu0 0.0
    %107 = vmatpush1.msra.mxu0 0.0
    %108 = vmatprep.subr.mxu0 0.0
    %109 = vmatpush1.msra.mxu0 0.0
    %110 = vmatprep.subr.mxu0 0.0
    %111 = vmatpush1.msra.mxu0 0.0
    %112 = vmatprep.subr.mxu0 0.0
    %113 = vmatpush1.msra.mxu0 0.0
    %114 = vmatprep.subr.mxu0 0.0
    %115 = vmatpush1.msra.mxu0 0.0
    %116 = vmatprep.subr.mxu0 0.0
    %117 = vmatpush1.msra.mxu0 0.0
    %118 = vmatprep.subr.mxu0 0.0
    %119 = vmatpush1.msra.mxu0 0.0
    %120 = vmatprep.mubr.f32.mxu0 0.0
    %121 = vmatmul.mubr.f32.gmra.mrb[0].mxu0 %v45
    %v122 = vpop.f32.mrb[0].mxu0
    %v123 = vadd.f32 0.0, %v122
    %v124 = vpop.f32.mrb[0].mxu0
    %125 = vmatprep.mubr.f32.mxu0 0.0
    %126 = vmatmul.mubr.f32.gmra.mrb[0].mxu0 %v48
    %v127 = vpop.f32.mrb[0].mxu0
    %v128 = vadd.f32 0.0, %v127
    %v129 = vpop.f32.mrb[0].mxu0
    %130 = vmatprep.mubr.f32.mxu0 0.0
    %131 = vmatmul.mubr.f32.gmra.mrb[0].mxu0 %v51
    %v132 = vpop.f32.mrb[0].mxu0
    %v133 = vadd.f32 0.0, %v132
    %v134 = vpop.f32.mrb[0].mxu0
    %135 = vmatprep.mubr.f32.mxu0 0.0
    %136 = vmatmul.mubr.f32.gmra.mrb[0].mxu0 %v54
    %v137 = vpop.f32.mrb[0].mxu0
    %v138 = vadd.f32 0.0, %v137
    %v139 = vpop.f32.mrb[0].mxu0
    %140 = vdwg.mxu0
    %v142 = vsel %vm43, %v27, 0
    %v145 = vsel %vm43, %v28, 0
    %v148 = vsel %vm43, %v29, 0
    %v151 = vsel %vm43, %v30, 0
    %153 = vmatprep.subr.mxu0 0.0
    %154 = vmatpush1.msra.mxu0 %v31
    %155 = vmatprep.subr.mxu0 0.0
    %156 = vmatpush1.msra.mxu0 %v32
    %157 = vmatprep.subr.mxu0 0.0
    %158 = vmatpush1.msra.mxu0 %v33
    %159 = vmatprep.subr.mxu0 0.0
    %160 = vmatpush1.msra.mxu0 %v34
    %161 = vmatprep.subr.mxu0 0.0
    %162 = vmatpush1.msra.mxu0 0.0
    %163 = vmatprep.subr.mxu0 0.0
    %164 = vmatpush1.msra.mxu0 0.0
    %165 = vmatprep.subr.mxu0 0.0
    %166 = vmatpush1.msra.mxu0 0.0
    %167 = vmatprep.subr.mxu0 0.0
    %168 = vmatpush1.msra.mxu0 0.0
    %169 = vmatprep.subr.mxu0 0.0
    %170 = vmatpush1.msra.mxu0 0.0
    %171 = vmatprep.subr.mxu0 0.0
    %172 = vmatpush1.msra.mxu0 0.0
    %173 = vmatprep.subr.mxu0 0.0
    %174 = vmatpush1.msra.mxu0 0.0
    %175 = vmatprep.subr.mxu0 0.0
    %176 = vmatpush1.msra.mxu0 0.0
    %177 = vmatprep.subr.mxu0 0.0
    %178 = vmatpush1.msra.mxu0 0.0
    %179 = vmatprep.subr.mxu0 0.0
    %180 = vmatpush1.msra.mxu0 0.0
    %181 = vmatprep.subr.mxu0 0.0
    %182 = vmatpush1.msra.mxu0 0.0
    %183 = vmatprep.subr.mxu0 0.0
    %184 = vmatpush1.msra.mxu0 0.0
    %185 = vmatprep.subr.mxu0 0.0
    %186 = vmatpush1.msra.mxu0 0.0
    %187 = vmatprep.subr.mxu0 0.0
    %188 = vmatpush1.msra.mxu0 0.0
    %189 = vmatprep.subr.mxu0 0.0
    %190 = vmatpush1.msra.mxu0 0.0
    %191 = vmatprep.subr.mxu0 0.0
    %192 = vmatpush1.msra.mxu0 0.0
    %193 = vmatprep.subr.mxu0 0.0
    %194 = vmatpush1.msra.mxu0 0.0
    %195 = vmatprep.subr.mxu0 0.0
    %196 = vmatpush1.msra.mxu0 0.0
    %197 = vmatprep.subr.mxu0 0.0
    %198 = vmatpush1.msra.mxu0 0.0
    %199 = vmatprep.subr.mxu0 0.0
    %200 = vmatpush1.msra.mxu0 0.0
    %201 = vmatprep.subr.mxu0 0.0
    %202 = vmatpush1.msra.mxu0 0.0
    %203 = vmatprep.subr.mxu0 0.0
    %204 = vmatpush1.msra.mxu0 0.0
    %205 = vmatprep.subr.mxu0 0.0
    %206 = vmatpush1.msra.mxu0 0.0
    %207 = vmatprep.subr.mxu0 0.0
    %208 = vmatpush1.msra.mxu0 0.0
    %209 = vmatprep.subr.mxu0 0.0
    %210 = vmatpush1.msra.mxu0 0.0
    %211 = vmatprep.subr.mxu0 0.0
    %212 = vmatpush1.msra.mxu0 0.0
    %213 = vmatprep.subr.mxu0 0.0
    %214 = vmatpush1.msra.mxu0 0.0
    %215 = vmatprep.subr.mxu0 0.0
    %216 = vmatpush1.msra.mxu0 0.0
    %217 = vmatprep.mubr.f32.mxu0 0.0
    %218 = vmatmul.mubr.f32.gmra.mrb[0].mxu0 %v142
    %v219 = vpop.f32.mrb[0].mxu0
    %v220 = vadd.f32 %v123, %v219
    %v221 = vpop.f32.mrb[0].mxu0
    %222 = vmatprep.mubr.f32.mxu0 0.0
    %223 = vmatmul.mubr.f32.gmra.mrb[0].mxu0 %v145
    %v224 = vpop.f32.mrb[0].mxu0
    %v225 = vadd.f32 %v128, %v224
    %v226 = vpop.f32.mrb[0].mxu0
    %227 = vmatprep.mubr.f32.mxu0 0.0
    %228 = vmatmul.mubr.f32.gmra.mrb[0].mxu0 %v148
    %v229 = vpop.f32.mrb[0].mxu0
    %v230 = vadd.f32 %v133, %v229
    %v231 = vpop.f32.mrb[0].mxu0
    %232 = vmatprep.mubr.f32.mxu0 0.0
    %233 = vmatmul.mubr.f32.gmra.mrb[0].mxu0 %v151
    %v234 = vpop.f32.mrb[0].mxu0
    %v235 = vadd.f32 %v138, %v234
    %v236 = vpop.f32.mrb[0].mxu0
    %237 = vdwg.mxu0
    %v238 = vld [vmem:[%s6] sm:$0x3]
    %v239 = vld [vmem:[%s3] sm:$0x3]
    %240 = vxpose.xlu0.b32.start [1/16] %v238, 128
    %241 = vxpose.xlu0.b32.cont [2/16] 0.0, 128
    %242 = vxpose.xlu0.b32.cont [3/16] 0.0, 128
    %243 = vxpose.xlu0.b32.cont [4/16] 0.0, 128
    %244 = vxpose.xlu0.b32.cont [5/16] 0.0, 128
    %245 = vxpose.xlu0.b32.cont [6/16] 0.0, 128
    %246 = vxpose.xlu0.b32.cont [7/16] 0.0, 128
    %247 = vxpose.xlu0.b32.cont [8/16] 0.0, 128
    %248 = vxpose.xlu0.b32.cont [9/16] 0.0, 128
    %249 = vxpose.xlu0.b32.cont [10/16] 0.0, 128
    %250 = vxpose.xlu0.b32.cont [11/16] 0.0, 128
    %251 = vxpose.xlu0.b32.cont [12/16] 0.0, 128
    %252 = vxpose.xlu0.b32.cont [13/16] 0.0, 128
    %253 = vxpose.xlu0.b32.cont [14/16] 0.0, 128
    %254 = vxpose.xlu0.b32.cont [15/16] 0.0, 128
    %255 = vxpose.xlu0.b32.end [16/16] 0.0, 128
    %v256 = vpop.trf.xlu0
    %v257 = vpop.trf.xlu0
    %v258 = vpop.trf.xlu0
    %v259 = vpop.trf.xlu0
    %v260 = vpop.trf.xlu0
    %v261 = vpop.trf.xlu0
    %v262 = vpop.trf.xlu0
    %v263 = vpop.trf.xlu0
    %v264 = vpop.trf.xlu0
    %v265 = vpop.trf.xlu0
    %v266 = vpop.trf.xlu0
    %v267 = vpop.trf.xlu0
    %v268 = vpop.trf.xlu0
    %v269 = vpop.trf.xlu0
    %v270 = vpop.trf.xlu0
    %v271 = vpop.trf.xlu0
    %vm272 = vcmask 15360
    %v274 = vsel %vm272, %v256, 0
    %v277 = vsel %vm272, %v257, 0
    %v280 = vsel %vm272, %v258, 0
    %v283 = vsel %vm272, %v259, 0
    %vm285 = vcmask 1041408
    %v287 = vsel %vm285, %v239, 0
    %289 = vmatprep.subr.mxu0 0.0
    %290 = vmatpush1.msra.mxu0 %v287
    %291 = vmatprep.subr.mxu0 0.0
    %292 = vmatpush1.msra.mxu0 0.0
    %293 = vmatprep.subr.mxu0 0.0
    %294 = vmatpush1.msra.mxu0 0.0
    %295 = vmatprep.subr.mxu0 0.0
    %296 = vmatpush1.msra.mxu0 0.0
    %297 = vmatprep.subr.mxu0 0.0
    %298 = vmatpush1.msra.mxu0 0.0
    %299 = vmatprep.subr.mxu0 0.0
    %300 = vmatpush1.msra.mxu0 0.0
    %301 = vmatprep.subr.mxu0 0.0
    %302 = vmatpush1.msra.mxu0 0.0
    %303 = vmatprep.subr.mxu0 0.0
    %304 = vmatpush1.msra.mxu0 0.0
    %305 = vmatprep.subr.mxu0 0.0
    %306 = vmatpush1.msra.mxu0 0.0
    %307 = vmatprep.subr.mxu0 0.0
    %308 = vmatpush1.msra.mxu0 0.0
    %309 = vmatprep.subr.mxu0 0.0
    %310 = vmatpush1.msra.mxu0 0.0
    %311 = vmatprep.subr.mxu0 0.0
    %312 = vmatpush1.msra.mxu0 0.0
    %313 = vmatprep.subr.mxu0 0.0
    %314 = vmatpush1.msra.mxu0 0.0
    %315 = vmatprep.subr.mxu0 0.0
    %316 = vmatpush1.msra.mxu0 0.0
    %317 = vmatprep.subr.mxu0 0.0
    %318 = vmatpush1.msra.mxu0 0.0
    %319 = vmatprep.subr.mxu0 0.0
    %320 = vmatpush1.msra.mxu0 0.0
    %321 = vmatprep.subr.mxu0 0.0
    %322 = vmatpush1.msra.mxu0 0.0
    %323 = vmatprep.subr.mxu0 0.0
    %324 = vmatpush1.msra.mxu0 0.0
    %325 = vmatprep.subr.mxu0 0.0
    %326 = vmatpush1.msra.mxu0 0.0
    %327 = vmatprep.subr.mxu0 0.0
    %328 = vmatpush1.msra.mxu0 0.0
    %329 = vmatprep.subr.mxu0 0.0
    %330 = vmatpush1.msra.mxu0 0.0
    %331 = vmatprep.subr.mxu0 0.0
    %332 = vmatpush1.msra.mxu0 0.0
    %333 = vmatprep.subr.mxu0 0.0
    %334 = vmatpush1.msra.mxu0 0.0
    %335 = vmatprep.subr.mxu0 0.0
    %336 = vmatpush1.msra.mxu0 0.0
    %337 = vmatprep.subr.mxu0 0.0
    %338 = vmatpush1.msra.mxu0 0.0
    %339 = vmatprep.subr.mxu0 0.0
    %340 = vmatpush1.msra.mxu0 0.0
    %341 = vmatprep.subr.mxu0 0.0
    %342 = vmatpush1.msra.mxu0 0.0
    %343 = vmatprep.subr.mxu0 0.0
    %344 = vmatpush1.msra.mxu0 0.0
    %345 = vmatprep.subr.mxu0 0.0
    %346 = vmatpush1.msra.mxu0 0.0
    %347 = vmatprep.subr.mxu0 0.0
    %348 = vmatpush1.msra.mxu0 0.0
    %349 = vmatprep.subr.mxu0 0.0
    %350 = vmatpush1.msra.mxu0 0.0
    %351 = vmatprep.subr.mxu0 0.0
    %352 = vmatpush1.msra.mxu0 0.0
    %353 = vmatprep.mubr.f32.mxu0 0.0
    %354 = vmatmul.mubr.f32.gmra.mrb[0].mxu0 %v274
    %v355 = vpop.f32.mrb[0].mxu0
    %v356 = vadd.f32 0.0, %v355
    %v357 = vpop.f32.mrb[0].mxu0
    %358 = vmatprep.mubr.f32.mxu0 0.0
    %359 = vmatmul.mubr.f32.gmra.mrb[0].mxu0 %v277
    %v360 = vpop.f32.mrb[0].mxu0
    %v361 = vadd.f32 0.0, %v360
    %v362 = vpop.f32.mrb[0].mxu0
    %363 = vmatprep.mubr.f32.mxu0 0.0
    %364 = vmatmul.mubr.f32.gmra.mrb[0].mxu0 %v280
    %v365 = vpop.f32.mrb[0].mxu0
    %v366 = vadd.f32 0.0, %v365
    %v367 = vpop.f32.mrb[0].mxu0
    %368 = vmatprep.mubr.f32.mxu0 0.0
    %369 = vmatmul.mubr.f32.gmra.mrb[0].mxu0 %v283
    %v370 = vpop.f32.mrb[0].mxu0
    %v371 = vadd.f32 0.0, %v370
    %v372 = vpop.f32.mrb[0].mxu0
    %373 = vdwg.mxu0
    %v374 = vadd.f32 %v220, %v356
    %v375 = vadd.f32 %v225, %v361
    %v376 = vadd.f32 %v230, %v366
    %v377 = vadd.f32 %v235, %v371
    %v378 = vtanh.pop %v374
    %v379 = vtanh.pop %v375
    %v380 = vtanh.pop %v376
    %v381 = vtanh.pop %v377
    %v382 = vld [vmem:[%s2] sm:$0x1]
    %v384 = vsel %vm43, %v382, 0
    %386 = vmatprep.subr.mxu0 0.0
    %387 = vmatpush1.msra.mxu0 %v378
    %388 = vmatprep.subr.mxu0 0.0
    %389 = vmatpush1.msra.mxu0 %v379
    %390 = vmatprep.subr.mxu0 0.0
    %391 = vmatpush1.msra.mxu0 %v380
    %392 = vmatprep.subr.mxu0 0.0
    %393 = vmatpush1.msra.mxu0 %v381
    %394 = vmatprep.subr.mxu0 0.0
    %395 = vmatpush1.msra.mxu0 0.0
    %396 = vmatprep.subr.mxu0 0.0
    %397 = vmatpush1.msra.mxu0 0.0
    %398 = vmatprep.subr.mxu0 0.0
    %399 = vmatpush1.msra.mxu0 0.0
    %400 = vmatprep.subr.mxu0 0.0
    %401 = vmatpush1.msra.mxu0 0.0
    %402 = vmatprep.subr.mxu0 0.0
    %403 = vmatpush1.msra.mxu0 0.0
    %404 = vmatprep.subr.mxu0 0.0
    %405 = vmatpush1.msra.mxu0 0.0
    %406 = vmatprep.subr.mxu0 0.0
    %407 = vmatpush1.msra.mxu0 0.0
    %408 = vmatprep.subr.mxu0 0.0
    %409 = vmatpush1.msra.mxu0 0.0
    %410 = vmatprep.subr.mxu0 0.0
    %411 = vmatpush1.msra.mxu0 0.0
    %412 = vmatprep.subr.mxu0 0.0
    %413 = vmatpush1.msra.mxu0 0.0
    %414 = vmatprep.subr.mxu0 0.0
    %415 = vmatpush1.msra.mxu0 0.0
    %416 = vmatprep.subr.mxu0 0.0
    %417 = vmatpush1.msra.mxu0 0.0
    %418 = vmatprep.subr.mxu0 0.0
    %419 = vmatpush1.msra.mxu0 0.0
    %420 = vmatprep.subr.mxu0 0.0
    %421 = vmatpush1.msra.mxu0 0.0
    %422 = vmatprep.subr.mxu0 0.0
    %423 = vmatpush1.msra.mxu0 0.0
    %424 = vmatprep.subr.mxu0 0.0
    %425 = vmatpush1.msra.mxu0 0.0
    %426 = vmatprep.subr.mxu0 0.0
    %427 = vmatpush1.msra.mxu0 0.0
    %428 = vmatprep.subr.mxu0 0.0
    %429 = vmatpush1.msra.mxu0 0.0
    %430 = vmatprep.subr.mxu0 0.0
    %431 = vmatpush1.msra.mxu0 0.0
    %432 = vmatprep.subr.mxu0 0.0
    %433 = vmatpush1.msra.mxu0 0.0
    %434 = vmatprep.subr.mxu0 0.0
    %435 = vmatpush1.msra.mxu0 0.0
    %436 = vmatprep.subr.mxu0 0.0
    %437 = vmatpush1.msra.mxu0 0.0
    %438 = vmatprep.subr.mxu0 0.0
    %439 = vmatpush1.msra.mxu0 0.0
    %440 = vmatprep.subr.mxu0 0.0
    %441 = vmatpush1.msra.mxu0 0.0
    %442 = vmatprep.subr.mxu0 0.0
    %443 = vmatpush1.msra.mxu0 0.0
    %444 = vmatprep.subr.mxu0 0.0
    %445 = vmatpush1.msra.mxu0 0.0
    %446 = vmatprep.subr.mxu0 0.0
    %447 = vmatpush1.msra.mxu0 0.0
    %448 = vmatprep.subr.mxu0 0.0
    %449 = vmatpush1.msra.mxu0 0.0
    %450 = vmatprep.mubr.f32.mxu0 0.0
    %451 = vmatmul.mubr.f32.gmra.mrb[0].mxu0 %v384
    %v452 = vpop.f32.mrb[0].mxu0
    %v453 = vadd.f32 0.0, %v452
    %v454 = vpop.f32.mrb[0].mxu0
    %455 = vdwg.mxu0
    %v456 = vlaneseq
    %v457 = vand.u32 %v456, 127
    %s458 = smul.u32 0, 16
    %v459 = vstv %s458
    %v460 = vadd.s32 %v457, %v459
    %vm461 = vcmp.lt.s32.totalorder %v460, 16
    %v462 = vsel %vm461, %v453, -1e+30
    %vm463 = vcmask 122880
    %v464 = vsel %vm463, %v462, -inf
    %465 = vmax.xlane.f32.xlu0 %v464
    %v466 = vpop.xlane.xlu0 %465
    %v467 = vsub.f32 %v462, %v466
    %v468 = vmul.f32 %v467, 1.442695
    %v469 = vpow.pop %v468
    %vm470 = vcmask 130048
    %v472 = vsel %vm470, %v469, 0
    %v474 = vsel %vm470, %v239, 0
    %476 = vmatprep.subr.mxu0 0.0
    %477 = vmatpush1.xpose.msra.mxu0 %v474
    %478 = vmatprep.subr.mxu0 0.0
    %479 = vmatpush1.xpose.msra.mxu0 0.0
    %480 = vmatprep.subr.mxu0 0.0
    %481 = vmatpush1.xpose.msra.mxu0 0.0
    %482 = vmatprep.subr.mxu0 0.0
    %483 = vmatpush1.xpose.msra.mxu0 0.0
    %484 = vmatprep.subr.mxu0 0.0
    %485 = vmatpush1.xpose.msra.mxu0 0.0
    %486 = vmatprep.subr.mxu0 0.0
    %487 = vmatpush1.xpose.msra.mxu0 0.0
    %488 = vmatprep.subr.mxu0 0.0
    %489 = vmatpush1.xpose.msra.mxu0 0.0
    %490 = vmatprep.subr.mxu0 0.0
    %491 = vmatpush1.xpose.msra.mxu0 0.0
    %492 = vmatprep.subr.mxu0 0.0
    %493 = vmatpush1.xpose.msra.mxu0 0.0
    %494 = vmatprep.subr.mxu0 0.0
    %495 = vmatpush1.xpose.msra.mxu0 0.0
    %496 = vmatprep.subr.mxu0 0.0
    %497 = vmatpush1.xpose.msra.mxu0 0.0
    %498 = vmatprep.subr.mxu0 0.0
    %499 = vmatpush1.xpose.msra.mxu0 0.0
    %500 = vmatprep.subr.mxu0 0.0
    %501 = vmatpush1.xpose.msra.mxu0 0.0
    %502 = vmatprep.subr.mxu0 0.0
    %503 = vmatpush1.xpose.msra.mxu0 0.0
    %504 = vmatprep.subr.mxu0 0.0
    %505 = vmatpush1.xpose.msra.mxu0 0.0
    %506 = vmatprep.subr.mxu0 0.0
    %507 = vmatpush1.xpose.msra.mxu0 0.0
    %508 = vmatprep.subr.mxu0 0.0
    %509 = vmatpush1.xpose.msra.mxu0 0.0
    %510 = vmatprep.subr.mxu0 0.0
    %511 = vmatpush1.xpose.msra.mxu0 0.0
    %512 = vmatprep.subr.mxu0 0.0
    %513 = vmatpush1.xpose.msra.mxu0 0.0
    %514 = vmatprep.subr.mxu0 0.0
    %515 = vmatpush1.xpose.msra.mxu0 0.0
    %516 = vmatprep.subr.mxu0 0.0
    %517 = vmatpush1.xpose.msra.mxu0 0.0
    %518 = vmatprep.subr.mxu0 0.0
    %519 = vmatpush1.xpose.msra.mxu0 0.0
    %520 = vmatprep.subr.mxu0 0.0
    %521 = vmatpush1.xpose.msra.mxu0 0.0
    %522 = vmatprep.subr.mxu0 0.0
    %523 = vmatpush1.xpose.msra.mxu0 0.0
    %524 = vmatprep.subr.mxu0 0.0
    %525 = vmatpush1.xpose.msra.mxu0 0.0
    %526 = vmatprep.subr.mxu0 0.0
    %527 = vmatpush1.xpose.msra.mxu0 0.0
    %528 = vmatprep.subr.mxu0 0.0
    %529 = vmatpush1.xpose.msra.mxu0 0.0
    %530 = vmatprep.subr.mxu0 0.0
    %531 = vmatpush1.xpose.msra.mxu0 0.0
    %532 = vmatprep.subr.mxu0 0.0
    %533 = vmatpush1.xpose.msra.mxu0 0.0
    %534 = vmatprep.subr.mxu0 0.0
    %535 = vmatpush1.xpose.msra.mxu0 0.0
    %536 = vmatprep.subr.mxu0 0.0
    %537 = vmatpush1.xpose.msra.mxu0 0.0
    %538 = vmatprep.subr.mxu0 0.0
    %539 = vmatpush1.xpose.msra.mxu0 0.0
    %540 = vmatprep.mubr.f32.mxu0 0.0
    %541 = vmatmul.mubr.f32.gmra.mrb[0].mxu0 %v472
    %v542 = vpop.f32.mrb[0].mxu0
    %v543 = vadd.f32 0.0, %v542
    %v544 = vpop.f32.mrb[0].mxu0
    %545 = vdwg.mxu0
    %v547 = vsel %vm272, %v543, 0
    %549 = vmatprep.subr.mxu0 0.0
    %550 = vmatpush1.msra.mxu0 %v287
    %551 = vmatprep.subr.mxu0 0.0
    %552 = vmatpush1.msra.mxu0 0.0
    %553 = vmatprep.subr.mxu0 0.0
    %554 = vmatpush1.msra.mxu0 0.0
    %555 = vmatprep.subr.mxu0 0.0
    %556 = vmatpush1.msra.mxu0 0.0
    %557 = vmatprep.subr.mxu0 0.0
    %558 = vmatpush1.msra.mxu0 0.0
    %559 = vmatprep.subr.mxu0 0.0
    %560 = vmatpush1.msra.mxu0 0.0
    %561 = vmatprep.subr.mxu0 0.0
    %562 = vmatpush1.msra.mxu0 0.0
    %563 = vmatprep.subr.mxu0 0.0
    %564 = vmatpush1.msra.mxu0 0.0
    %565 = vmatprep.subr.mxu0 0.0
    %566 = vmatpush1.msra.mxu0 0.0
    %567 = vmatprep.subr.mxu0 0.0
    %568 = vmatpush1.msra.mxu0 0.0
    %569 = vmatprep.subr.mxu0 0.0
    %570 = vmatpush1.msra.mxu0 0.0
    %571 = vmatprep.subr.mxu0 0.0
    %572 = vmatpush1.msra.mxu0 0.0
    %573 = vmatprep.subr.mxu0 0.0
    %574 = vmatpush1.msra.mxu0 0.0
    %575 = vmatprep.subr.mxu0 0.0
    %576 = vmatpush1.msra.mxu0 0.0
    %577 = vmatprep.subr.mxu0 0.0
    %578 = vmatpush1.msra.mxu0 0.0
    %579 = vmatprep.subr.mxu0 0.0
    %580 = vmatpush1.msra.mxu0 0.0
    %581 = vmatprep.subr.mxu0 0.0
    %582 = vmatpush1.msra.mxu0 0.0
    %583 = vmatprep.subr.mxu0 0.0
    %584 = vmatpush1.msra.mxu0 0.0
    %585 = vmatprep.subr.mxu0 0.0
    %586 = vmatpush1.msra.mxu0 0.0
    %587 = vmatprep.subr.mxu0 0.0
    %588 = vmatpush1.msra.mxu0 0.0
    %589 = vmatprep.subr.mxu0 0.0
    %590 = vmatpush1.msra.mxu0 0.0
    %591 = vmatprep.subr.mxu0 0.0
    %592 = vmatpush1.msra.mxu0 0.0
    %593 = vmatprep.subr.mxu0 0.0
    %594 = vmatpush1.msra.mxu0 0.0
    %595 = vmatprep.subr.mxu0 0.0
    %596 = vmatpush1.msra.mxu0 0.0
    %597 = vmatprep.subr.mxu0 0.0
    %598 = vmatpush1.msra.mxu0 0.0
    %599 = vmatprep.subr.mxu0 0.0
    %600 = vmatpush1.msra.mxu0 0.0
    %601 = vmatprep.subr.mxu0 0.0
    %602 = vmatpush1.msra.mxu0 0.0
    %603 = vmatprep.subr.mxu0 0.0
    %604 = vmatpush1.msra.mxu0 0.0
    %605 = vmatprep.subr.mxu0 0.0
    %606 = vmatpush1.msra.mxu0 0.0
    %607 = vmatprep.subr.mxu0 0.0
    %608 = vmatpush1.msra.mxu0 0.0
    %609 = vmatprep.subr.mxu0 0.0
    %610 = vmatpush1.msra.mxu0 0.0
    %611 = vmatprep.subr.mxu0 0.0
    %612 = vmatpush1.msra.mxu0 0.0
    %613 = vmatprep.mubr.f32.mxu0 0.0
    %614 = vmatmul.mubr.f32.gmra.mrb[0].mxu0 %v547
    %v615 = vpop.f32.mrb[0].mxu0
    %v616 = vadd.f32 0.0, %v615
    %v617 = vpop.f32.mrb[0].mxu0
    %618 = vdwg.mxu0
    %v619 = vrcp.pop %v616
    %v620 = vmul.f32 %v469, %v619
    %621 = vst.msk [vmem:[#allocation2] sm:$0x1] %vm463, %v620
    // Predicated region
    $region30: #{tpu_custom_call.1} parent=1 // pred_check
      _
    $region31: #{tpu_custom_call.1} parent=1 // pred_check_branch
      %623 = sbr.rel (0) target = $region33
    $region32: #{tpu_custom_call.1} parent=1 // pred_region
      %s625 = ssub.s32 16, 16
      %626 = vsyncadd [#allocation3], %s625
      %s628 = sshll.u32 [#allocation2], 4
      %s629 = int_to_ptr.vmem [resolvable:$true] %s628
      %631 = dma.vmem_to_hbm [thread:$0]  %s629, 16, %s7, [#allocation3]
    $region33: #{tpu_custom_call.1} parent=1 // pred_fallthru
      _
    // Predicated region
    $region34: #{tpu_custom_call.1} parent=1 // pred_check
      _
    $region35: #{tpu_custom_call.1} parent=1 // pred_check_branch
      %633 = sbr.rel (0) target = $region37
    $region36: #{tpu_custom_call.1} parent=1 // pred_region
      %634 = dma.done [#allocation3], 16
    $region37: #{tpu_custom_call.1} parent=1 // pred_fallthru
      _
    %635 = vsyncpa [#allocation3], 1

</llo_original>
